<compile_context>
chip_gen: v7x
topology: tpu7x:2x2x1
jax: 0.10.0
libtpu: 0.0.40
codegen_flags: <defaults>
</compile_context>

<pallas_src>
import jax
import jax.numpy as jnp
from jax.experimental import pallas as pl
from jax.experimental.pallas import tpu as pltpu

_LANE = 128
# ~2 MiB f32 input block per DMA: measured tile-size curve puts this at ~85%
# of HBM roofline while keeping total VMEM (in double buffer + out double
# buffer) ~= 8 MiB, inside every generation's default scoped-VMEM limit.
_TARGET_TILE_BYTES = 2 * 1024 * 1024


def _pick_tile_rows(rows: int, max_rows: int) -> int:
    """Largest row-tile that is a multiple of 8, divides `rows`, and is
    <= max_rows; full extent if rows already fits."""
    if rows <= max_rows:
        return rows                      # full extent -> always a legal block
    start = max_rows - (max_rows % 8)
    for t in range(start, 7, -8):
        if rows % t == 0:
            return t
    # TODO(synk): no aligned divisor (very unusual image sizes); fall back to
    # one full-extent tile -- may need vmem_limit_bytes for huge images.
    return rows


def _seg_mask_kernel(kept_idx_ref, kept_count_ref, masks_hbm, out_ref,
                     buf, sem):
    """One grid step == one (image, spatial tile) pair.

    kept_idx_ref   : (B, N) int32 SMEM -- compacted kept-instance indices
    kept_count_ref : (B,)   int32 SMEM -- number of kept instances per image
    masks_hbm      : (B, N, R, C) f32 HBM (memory_space=pl.ANY)
    out_ref        : (1, tile_r, C) f32 VMEM output block
    buf            : (2, tile_r, C) f32 VMEM manual double buffer
    sem            : DMA semaphores, shape (2,)
    """
    b = pl.program_id(0)
    p = pl.program_id(1)
    tile_r = buf.shape[1]
    n_keep = kept_count_ref[b]
    r0 = pl.multiple_of(p * tile_r, tile_r)

    def fetch(s, slot):
        idx = kept_idx_ref[b, s]
        pltpu.make_async_copy(
            masks_hbm.at[b, idx, pl.ds(r0, tile_r), :],
            buf.at[slot],
            sem.at[slot],
        ).start()

    # 'no kept instance -> zeros'.  Masks are sigmoid outputs in [0, 1], so a
    # zero accumulator is also the identity of the Goedel OR (max).
    out_ref[...] = jnp.zeros_like(out_ref)

    @pl.when(n_keep > 0)
    def _run():
        fetch(0, 0)

        @pl.loop(0, n_keep)
        def _step(s):
            slot = s & 1
            # Wait on the DMA for this slot (only dst/sem shape matters).
            pltpu.make_async_copy(
                masks_hbm.at[b, 0, pl.ds(r0, tile_r), :],
                buf.at[slot],
                sem.at[slot],
            ).wait()

            @pl.when(s + 1 < n_keep)
            def _prefetch():
                fetch(s + 1, 1 - slot)

            # Goedel fuzzy logical OR over instances == running max.
            out_ref[0] = jnp.maximum(out_ref[0], buf[slot])


def mask_rcnn_to_seg_mask(scores, labels, masks, *,
                          min_score: float = 0.0, target_class: int = 1):
    """Pallas implementation of MaskRCNNToSegMask.forward.

    scores : (B, N) float32       -- detection scores per instance
    labels : (B, N) int32         -- class label per instance
    masks  : (B, N, 1, H, W) f32  -- per-instance soft masks (sigmoid outputs)
    returns: (B, 1, H, W) float32 semantic segmentation mask per image
    """
    B, N, C, H, W = masks.shape
    assert C == 1, "Mask R-CNN instance masks have a single channel"
    hw = H * W

    # ---- metadata-only lane-dense reshape (no copy, no cast, no pad) -------
    if hw % _LANE == 0:
        cols = _LANE                     # fully lane-dense layout
    else:
        # TODO(synk): lanes underutilized if W < 128; an in-kernel masked
        # remainder tile would allow a full 128-lane layout for any H*W.
        cols = W
    rows = hw // cols
    masks_r = masks.reshape(B, N, rows, cols).astype(jnp.float32)

    max_rows = max(8, (_TARGET_TILE_BYTES // (4 * cols)) // 8 * 8)
    tile_r = _pick_tile_rows(rows, max_rows)
    num_r_tiles = rows // tile_r

    # ---- cheap O(B*N) filter / compaction in plain JAX ---------------------
    keep = (scores.astype(jnp.float32) >= jnp.float32(min_score)) & \
           (labels.astype(jnp.int32) == jnp.int32(target_class))      # (B, N)
    kept_count = keep.sum(axis=1).astype(jnp.int32)                   # (B,)
    # Stable argsort puts kept-instance indices first; slots past kept_count
    # are never read by the kernel (loop is bounded by kept_count).
    kept_idx = jnp.argsort(jnp.where(keep, 0, 1).astype(jnp.int32),
                           axis=1, stable=True).astype(jnp.int32)     # (B, N)

    out = pl.pallas_call(
        _seg_mask_kernel,
        out_shape=jax.ShapeDtypeStruct((B, rows, cols), jnp.float32),
        grid_spec=pltpu.PrefetchScalarGridSpec(
            num_scalar_prefetch=2,               # kept_idx, kept_count -> SMEM
            grid=(B, num_r_tiles),
            in_specs=[
                # Masks stay in HBM; kept instances are DMA'd manually.
                pl.BlockSpec(memory_space=pl.ANY),
            ],
            out_specs=pl.BlockSpec(
                (1, tile_r, cols),
                lambda b, p, kept_idx, kept_count: (b, p, 0)),
            scratch_shapes=[
                pltpu.VMEM((2, tile_r, cols), jnp.float32),  # double buffer
                pltpu.SemaphoreType.DMA((2,)),
            ],
        ),
        compiler_params=pltpu.CompilerParams(
            dimension_semantics=("parallel", "parallel")),
    )(kept_idx, kept_count, masks_r)

    return out.reshape(B, 1, H, W)


if __name__ == "__main__":
    B, N, H, W = 2, 8, 16, 16
    min_score, target_class = 0.3, 1

    key = jax.random.PRNGKey(0)
    k_scores, k_labels, k_masks = jax.random.split(key, 3)
    scores = jax.random.uniform(k_scores, (B, N), dtype=jnp.float32)
    labels = jax.random.randint(k_labels, (B, N), 1, 4, dtype=jnp.int32)
    masks = jax.random.uniform(k_masks, (B, N, 1, H, W), dtype=jnp.float32)
    # Exercise the 'no instance kept -> all-zero mask' path for image 1.
    scores = scores.at[1].set(0.0)

    out = mask_rcnn_to_seg_mask(scores, labels, masks,
                                min_score=min_score,
                                target_class=target_class)
    out = jax.block_until_ready(out)

    # Pure-JAX reference (same semantics as the torch module with Goedel OR).
    keep = (scores >= min_score) & (labels == target_class)           # (B, N)
    ref = jnp.max(jnp.where(keep[:, :, None, None, None], masks, 0.0),
                  axis=1)                                             # (B,1,H,W)

    assert out.shape == (B, 1, H, W), out.shape
    assert jnp.allclose(out, ref, atol=1e-6), "mismatch vs reference"
    print("KERNEL_OK")
</pallas_src>

<mosaic_0001>
module attributes {stable_mosaic.version = 11 : i64} {
  func.func @_seg_mask_kernel(%arg0: i32, %arg1: i32, %arg2: memref<2x8xi32, #tpu.memory_space<smem>>, %arg3: memref<2xi32, #tpu.memory_space<smem>>, %arg4: memref<2x8x2x128xf32, #tpu.memory_space<any>>, %arg5: memref<1x2x128xf32, #tpu.memory_space<vmem>>, %arg6: memref<2x2x128xf32, #tpu.memory_space<vmem>>, %arg7: memref<2x!tpu.dma_semaphore, #tpu.memory_space<semaphore_mem>>) attributes {dimension_semantics = [#tpu.dimension_semantics<parallel>, #tpu.dimension_semantics<parallel>], iteration_bounds = array<i64: 2, 1>, scalar_prefetch = 2 : i64, scratch_operands = 2 : i64, tpu.core_type = #tpu.core_type<tc>, window_params = [{}, {transform_indices = @transform_1, window_bounds = array<i64: 1, 2, 128>}]} {
    %0 = arith.index_cast %arg0 : i32 to index
    %1 = memref.load %arg3[%0] : memref<2xi32, #tpu.memory_space<smem>>
    %c2_i32 = arith.constant 2 : i32
    %2 = arith.muli %arg1, %c2_i32 : i32
    %3 = tpu.assume_multiple %2, 2 : i32
    %cst = arith.constant 0.000000e+00 : f32
    %4 = vector.broadcast %cst : f32 to vector<1x2x128xf32>
    %c0 = arith.constant 0 : index
    %c0_0 = arith.constant 0 : index
    %c0_1 = arith.constant 0 : index
    %5 = vector.load %arg5[%c0, %c0_0, %c0_1] : memref<1x2x128xf32, #tpu.memory_space<vmem>>, vector<1x2x128xf32>
    tpu.vector_store %arg5[%c0, %c0_0, %c0_1], %4 {strides = array<i32>} : memref<1x2x128xf32, #tpu.memory_space<vmem>>, vector<1x2x128xf32>,
    %c0_i32 = arith.constant 0 : i32
    %6 = arith.cmpi sgt, %1, %c0_i32 : i32
    %7 = arith.extui %6 : i1 to i32
    %c0_i32_2 = arith.constant 0 : i32
    %8 = arith.cmpi ne, %7, %c0_i32_2 : i32
    scf.if %8 {
      %9 = arith.index_cast %arg0 : i32 to index
      %c0_3 = arith.constant 0 : index
      %10 = memref.load %arg2[%9, %c0_3] : memref<2x8xi32, #tpu.memory_space<smem>>
      %c0_i32_4 = arith.constant 0 : i32
      %c0_i32_5 = arith.constant 0 : i32
      %c0_i32_6 = arith.constant 0 : i32
      %11 = tpu.memref_slice %arg4[%arg0, %10, %3, %c0_i32_6] : memref<2x8x2x128xf32, #tpu.memory_space<any>> -> memref<1x1x2x128xf32, #tpu.memory_space<any>>
      %12 = tpu.memref_squeeze %11 : memref<1x1x2x128xf32, #tpu.memory_space<any>> -> memref<2x128xf32, #tpu.memory_space<any>>
      %c0_i32_7 = arith.constant 0 : i32
      %c0_i32_8 = arith.constant 0 : i32
      %13 = tpu.memref_slice %arg6[%c0_i32_4, %c0_i32_7, %c0_i32_8] : memref<2x2x128xf32, #tpu.memory_space<vmem>> -> memref<1x2x128xf32, #tpu.memory_space<vmem>>
      %14 = tpu.memref_squeeze %13 : memref<1x2x128xf32, #tpu.memory_space<vmem>> -> memref<2x128xf32, #tpu.memory_space<vmem>>
      %15 = tpu.memref_slice %arg7[%c0_i32_5] : memref<2x!tpu.dma_semaphore, #tpu.memory_space<semaphore_mem>> -> memref<1x!tpu.dma_semaphore, #tpu.memory_space<semaphore_mem>>
      %16 = tpu.memref_squeeze %15 : memref<1x!tpu.dma_semaphore, #tpu.memory_space<semaphore_mem>> -> memref<!tpu.dma_semaphore, #tpu.memory_space<semaphore_mem>>
      tpu.enqueue_dma source(%12 : memref<2x128xf32, #tpu.memory_space<any>>) target(%14 : memref<2x128xf32, #tpu.memory_space<vmem>>) target_semaphore(%16 : memref<!tpu.dma_semaphore, #tpu.memory_space<semaphore_mem>>)
      %c0_i32_9 = arith.constant 0 : i32
      %17 = arith.subi %1, %c0_i32_9 : i32
      %c1_i32 = arith.constant 1 : i32
      %c1_i32_10 = arith.constant 1 : i32
      %18 = arith.subi %c1_i32, %c1_i32_10 : i32
      %19 = arith.addi %17, %18 : i32
      %c1_i32_11 = arith.constant 1 : i32
      %20 = arith.divsi %19, %c1_i32_11 : i32
      %c1_i32_12 = arith.constant 1 : i32
      %c0_i32_13 = arith.constant 0 : i32
      %c0_i32_14 = arith.constant 0 : i32
      %21 = arith.subi %20, %c0_i32_14 : i32
      %22 = arith.addi %c0_i32_14, %21 : i32
      %c1_i32_15 = arith.constant 1 : i32
      scf.for %arg8 = %c0_i32_14 to %22 step %c1_i32_15  : i32 {
        %23 = arith.muli %arg8, %c1_i32_12 : i32
        %24 = arith.addi %c0_i32_13, %23 : i32
        %c1_i32_16 = arith.constant 1 : i32
        %25 = arith.andi %24, %c1_i32_16 : i32
        %c0_i32_17 = arith.constant 0 : i32
        %c0_i32_18 = arith.constant 0 : i32
        %26 = tpu.memref_slice %arg4[%arg0, %c0_i32_17, %3, %c0_i32_18] : memref<2x8x2x128xf32, #tpu.memory_space<any>> -> memref<1x1x2x128xf32, #tpu.memory_space<any>>
        %27 = tpu.memref_squeeze %26 : memref<1x1x2x128xf32, #tpu.memory_space<any>> -> memref<2x128xf32, #tpu.memory_space<any>>
        %c0_i32_19 = arith.constant 0 : i32
        %c0_i32_20 = arith.constant 0 : i32
        %28 = tpu.memref_slice %arg6[%25, %c0_i32_19, %c0_i32_20] : memref<2x2x128xf32, #tpu.memory_space<vmem>> -> memref<1x2x128xf32, #tpu.memory_space<vmem>>
        %29 = tpu.memref_squeeze %28 : memref<1x2x128xf32, #tpu.memory_space<vmem>> -> memref<2x128xf32, #tpu.memory_space<vmem>>
        %30 = tpu.memref_slice %arg7[%25] : memref<2x!tpu.dma_semaphore, #tpu.memory_space<semaphore_mem>> -> memref<1x!tpu.dma_semaphore, #tpu.memory_space<semaphore_mem>>
        %31 = tpu.memref_squeeze %30 : memref<1x!tpu.dma_semaphore, #tpu.memory_space<semaphore_mem>> -> memref<!tpu.dma_semaphore, #tpu.memory_space<semaphore_mem>>
        tpu.wait_dma2 semaphore(%31 : memref<!tpu.dma_semaphore, #tpu.memory_space<semaphore_mem>>) src(%27 : memref<2x128xf32, #tpu.memory_space<any>>) dst(%29 : memref<2x128xf32, #tpu.memory_space<vmem>>)
        %c1_i32_21 = arith.constant 1 : i32
        %32 = arith.addi %24, %c1_i32_21 : i32
        %33 = arith.cmpi slt, %32, %1 : i32
        %34 = arith.extui %33 : i1 to i32
        %c0_i32_22 = arith.constant 0 : i32
        %35 = arith.cmpi ne, %34, %c0_i32_22 : i32
        scf.if %35 {
          %c1_i32_31 = arith.constant 1 : i32
          %45 = arith.addi %24, %c1_i32_31 : i32
          %c1_i32_32 = arith.constant 1 : i32
          %46 = arith.subi %c1_i32_32, %25 : i32
          %47 = arith.index_cast %arg0 : i32 to index
          %48 = arith.index_cast %45 : i32 to index
          %49 = memref.load %arg2[%47, %48] : memref<2x8xi32, #tpu.memory_space<smem>>
          %c0_i32_33 = arith.constant 0 : i32
          %50 = tpu.memref_slice %arg4[%arg0, %49, %3, %c0_i32_33] : memref<2x8x2x128xf32, #tpu.memory_space<any>> -> memref<1x1x2x128xf32, #tpu.memory_space<any>>
          %51 = tpu.memref_squeeze %50 : memref<1x1x2x128xf32, #tpu.memory_space<any>> -> memref<2x128xf32, #tpu.memory_space<any>>
          %c0_i32_34 = arith.constant 0 : i32
          %c0_i32_35 = arith.constant 0 : i32
          %52 = tpu.memref_slice %arg6[%46, %c0_i32_34, %c0_i32_35] : memref<2x2x128xf32, #tpu.memory_space<vmem>> -> memref<1x2x128xf32, #tpu.memory_space<vmem>>
          %53 = tpu.memref_squeeze %52 : memref<1x2x128xf32, #tpu.memory_space<vmem>> -> memref<2x128xf32, #tpu.memory_space<vmem>>
          %54 = tpu.memref_slice %arg7[%46] : memref<2x!tpu.dma_semaphore, #tpu.memory_space<semaphore_mem>> -> memref<1x!tpu.dma_semaphore, #tpu.memory_space<semaphore_mem>>
          %55 = tpu.memref_squeeze %54 : memref<1x!tpu.dma_semaphore, #tpu.memory_space<semaphore_mem>> -> memref<!tpu.dma_semaphore, #tpu.memory_space<semaphore_mem>>
          tpu.enqueue_dma source(%51 : memref<2x128xf32, #tpu.memory_space<any>>) target(%53 : memref<2x128xf32, #tpu.memory_space<vmem>>) target_semaphore(%55 : memref<!tpu.dma_semaphore, #tpu.memory_space<semaphore_mem>>)
        } else {
        }
        %c0_23 = arith.constant 0 : index
        %c0_24 = arith.constant 0 : index
        %c0_25 = arith.constant 0 : index
        %36 = vector.load %arg5[%c0_23, %c0_24, %c0_25] : memref<1x2x128xf32, #tpu.memory_space<vmem>>, vector<1x2x128xf32>
        %37 = vector.shape_cast %36 : vector<1x2x128xf32> to vector<2x128xf32>
        %38 = arith.index_cast %25 : i32 to index
        %c0_26 = arith.constant 0 : index
        %c0_27 = arith.constant 0 : index
        %39 = vector.load %arg6[%38, %c0_26, %c0_27] : memref<2x2x128xf32, #tpu.memory_space<vmem>>, vector<1x2x128xf32>
        %40 = vector.shape_cast %39 : vector<1x2x128xf32> to vector<2x128xf32>
        %41 = arith.maximumf %37, %40 : vector<2x128xf32>
        %c0_28 = arith.constant 0 : index
        %c0_29 = arith.constant 0 : index
        %c0_30 = arith.constant 0 : index
        %42 = vector.load %arg5[%c0_28, %c0_29, %c0_30] : memref<1x2x128xf32, #tpu.memory_space<vmem>>, vector<1x2x128xf32>
        %43 = vector.shape_cast %42 : vector<1x2x128xf32> to vector<2x128xf32>
        %44 = vector.shape_cast %41 : vector<2x128xf32> to vector<1x2x128xf32>
        tpu.vector_store %arg5[%c0_28, %c0_29, %c0_30], %44 {strides = array<i32>} : memref<1x2x128xf32, #tpu.memory_space<vmem>>, vector<1x2x128xf32>,
      }
    } else {
    }
    return
  }
  func.func @transform_1(%arg0: i32, %arg1: i32, %arg2: memref<2x8xi32, #tpu.memory_space<smem>>, %arg3: memref<2xi32, #tpu.memory_space<smem>>) -> (i32, i32, i32) {
    %c0_i32 = arith.constant 0 : i32
    %c0_i32_0 = arith.constant 0 : i32
    return %arg0, %arg1, %c0_i32 : i32, i32, i32
  }
}

</mosaic_0001>

<llo_original>
// kernel: tpu_custom_call.1
$region0: #{tpu_custom_call.1}
  #allocation0 [shape = 'u32[]', space=smem, size = 0x4, offset = 0x4, fixed_abs, tag = 'smem constant byte address 0x4 - core index']
  #allocation1 [shape = 'u32[144,128]{1,0:T(1,128)}', space=vmem, size = 0x12000, scoped, tag = 'internal scratch']
  #allocation2 [shape = 'f32[2,2,128]{2,1,0:T(2,128)}', space=vmem, size = 0x800, scoped, tag = 'scratch operand']
  #allocation3 [shape = 's32[2]{0}', space=sflag, size = 0x8, scoped, tag = 'scratch operand']
  #allocation4 [shape = 's32[1]{0}', space=sflag, size = 0x4, scoped, tag = 'scoped memory for tpu_custom_call.1']
  #allocation5 [shape = 'u8[1024]{0}', space=smem, size = 0x400, scoped, tag = 'prefetched SMEM operand 0']
  #allocation6 [shape = 'u8[512]{0}', space=smem, size = 0x200, scoped, tag = 'prefetched SMEM operand 1']
  #allocation9 [shape = 's32[]', space=sflag, size = 0x4, offset = 0, fixed_abs, tag = 'sflag constant byte address 0x0 - dummy sync flag']
  #allocation10 [shape = 's32[]', space=sflag, size = 0x4, offset = 0, fixed_abs, tag = 'sflag constant byte address 0x0 - dummy sync flag']
  #allocation11 [shape = 'u32[]', space=smem, size = 0x4, offset = 0x44, fixed_abs, tag = 'smem constant byte address 0x44 - assertion arg 0']
  #allocation12 [shape = 'u32[]', space=smem, size = 0x4, offset = 0x48, fixed_abs, tag = 'smem constant byte address 0x48 - assertion arg 1']
  #allocation13 [shape = 's32[]', space=sflag, size = 0x4, offset = 0, fixed_abs, tag = 'sflag constant byte address 0x0 - dummy sync flag']
  #allocation14 [shape = 's32[]', space=sflag, size = 0x4, offset = 0, fixed_abs, tag = 'sflag constant byte address 0x0 - dummy sync flag']
  %s0 = inlined_call_operand.hbm [shape: s32[2,8], index: 0, kind: input, shape index: {}]
  %s1 = inlined_call_operand.vmem [shape: s32[2], index: 1, kind: input, shape index: {}]
  %s2 = inlined_call_operand.hbm [shape: f32[2,8,2,128], index: 2, kind: input, shape index: {}]
  %s3 = inlined_call_operand.hbm [shape: f32[2,2,128], index: 3, kind: output, shape index: {}]
  %s4 = sld [smem:[#allocation0]]
  $region48: #{tpu_custom_call.1} parent=0
    _
  %s6 = ssub.s32 1, %s4
  %s7 = scalar_select 0, %s6, %s4
  %9 = dma.hbm_to_smem %s0, 32, [#allocation5], [#allocation4]
  %s10 = sshll.u32 %s1, 4
  %s11 = int_to_ptr.vmem [resolvable:$true] %s10
  %13 = dma.vmem_to_smem %s11, 16, [#allocation6], [#allocation4]
  %14 = dma.done [#allocation4], 48
  %15 = sfence
  $region1: #{tpu_custom_call.1} parent=0
    #allocation7 [shape = 'u8[2048]{0}', space=vmem, size = 0x800, scoped, tag = 'output window, operand 0']
    #allocation8 [shape = 's32[2]{0}', space=sflag, size = 0x8, scoped, tag = 'scoped memory for tpu_custom_call.1']
    %16 = vsyncpa [#allocation8], 0
    %s17 = scalar_lea.sflag [#allocation8], 1
    %18 = vsyncpa %s17, 0
    loop: start=0, step=1, limit=3
    $region2: #{tpu_custom_call.1} parent=1 // loop_pre_header
      _
    $region3: #{tpu_custom_call.1} parent=1 // loop_header
      %s20 = sphi 0, %s24
      %p21 = scmp.ge.s32.totalorder %s20, 3
      %s26 = sphi 0, %s36
      %s27 = sphi 0, %s32
      %s28 = sphi 0, %s26
      %s29 = sphi 0, %s27
      %s41 = sphi 0, %s43
      %s44 = sphi 0, %s41
      %s54 = sphi 0, %s44
    $region4: #{tpu_custom_call.1} parent=1 // loop_header_branch
      %23 = sbr.rel (%p21) target = $region8
    $region5: #{tpu_custom_call.1} parent=1 // loop_body
      %s25 = ssub.s32 %s20, 1
      %s30 = sadd.s32 1, %s27
      %p31 = scmp.ge.s32.totalorder %s30, 1
      %s32 = scalar_select %p31, 0, %s30
      %s33 = sadd.s32 1, %s26
      %s34 = scalar_select %p31, %s33, %s26
      %p35 = scmp.ge.s32.totalorder %s34, 2
      %s36 = scalar_select %p35, 0, %s34
      %s37 = ssub.s32 %s26, %s36
      %s38 = ssub.s32 %s27, %s32
      %s39 = sor.u32 %s37, %s38
      %p40 = scmp.eq.s32.totalorder %s39, 0
      %s42 = sadd.s32 %s41, 1
      %s43 = scalar_select %p40, %s41, %s42
      %p45 = pneg %p40
      %p46 = scmp.eq.s32.totalorder %s20, 1
      %p47 = por %p45, %p46
      %p48 = scmp.ne.s32.totalorder %s41, %s44
      %p49 = scmp.eq.s32.totalorder %s20, 0
      %p50 = por %p48, %p49
      %p51 = scmp.ne.s32.totalorder %s41, %s44
      %p52 = scmp.eq.s32.totalorder %s25, 1
      %p53 = por %p51, %p52
      %p55 = scmp.ne.s32.totalorder %s44, %s54
      %p56 = scmp.eq.s32.totalorder %s25, 0
      %p57 = por %p55, %p56
      %p58 = scmp.lt.s32.totalorder %s20, 2
      // Predicated region
      $region9: #{tpu_custom_call.1} parent=5 // pred_check
        %p59 = pneg %p58
      $region10: #{tpu_custom_call.1} parent=5 // pred_check_branch
        %61 = sbr.rel (%p59) target = $region12
      $region11: #{tpu_custom_call.1} parent=5 // pred_region
        %p62 = pneg %p50
        %p63 = pneg %p47
        %s64 = sand.u32 %s41, 1
        %s65 = scalar_lea.sflag [#allocation8], %s64
        %s66 = sand.u32 %s41, 1
        %s67 = smul.addr %s66, 2
        %s68 = scalar_lea.vmem [#allocation7], %s67
        %s69 = sld [smem:[#allocation6 + %s26]]
        %s70 = smul.u32 %s27, 2
        %71 = vst [vmem:[%s68] sm:$0x3] 0.0
        %p72 = scmp.gt.s32.totalorder %s69, 0
        // Predicated region
        $region13: #{tpu_custom_call.1} parent=11 // pred_check
          %p73 = pneg %p72
        $region14: #{tpu_custom_call.1} parent=11 // pred_check_branch
          %75 = sbr.rel (%p73) target = $region16
        $region15: #{tpu_custom_call.1} parent=11 // pred_region
          %s76 = smul.u32 %s26, 128
          %s77 = sld [smem:[#allocation5 + %s76]]
          %s78 = smul.u32 %s77, 2
          %s79 = sadd.s32 %s70, %s78
          %s80 = smul.u32 %s26, 16
          %s81 = sadd.s32 %s79, %s80
          %s82 = smul.addr %s81, 16
          %s83 = scalar_lea.hbm %s2, %s82
          // Predicated region
          $region17: #{tpu_custom_call.1} parent=15 // pred_check
            _
          $region18: #{tpu_custom_call.1} parent=15 // pred_check_branch
            %85 = sbr.rel target = $region20
          $region19: #{tpu_custom_call.1} parent=15 // pred_region
            %86 = sst [smem:[#allocation11]] [#allocation10]
            %87 = sst [smem:[#allocation12]] [#allocation9]
          $region20: #{tpu_custom_call.1} parent=15 // pred_fallthru
            _
          %89 = shalt.err (0)
          %s91 = sshll.u32 [#allocation2], 4
          %s92 = int_to_ptr.vmem [resolvable:$true] %s91
          %94 = dma.hbm_to_vmem [thread:$0]  %s83, 32, %s92, [#allocation3]
          // While loop
          $region21: #{tpu_custom_call.1} parent=15 // loop_pre_header
            _
          $region22: #{tpu_custom_call.1} parent=15 // loop_header
            %s96 = sphi 0, %s98
            %p97 = scmp.ge.s32.totalorder %s96, %s69
          $region23: #{tpu_custom_call.1} parent=15 // loop_header_branch
            %100 = sbr.rel (%p97) target = $region27
          $region24: #{tpu_custom_call.1} parent=15 // loop_body
            %s101 = sand.u32 %s96, 1
            %s102 = smul.u32 %s101, 2
            %s103 = scalar_lea.vmem [#allocation2], %s102
            %s104 = scalar_lea.sflag [#allocation3], %s101
            %s105 = smul.u32 2, 1
            %s106 = sshll.u32 %s105, 4
            %107 = dma.done %s104, %s106
            %s108 = sadd.s32 %s96, 1
            %p109 = scmp.lt.s32.totalorder %s108, %s69
            // Predicated region
            $region28: #{tpu_custom_call.1} parent=24 // pred_check
              %p110 = pneg %p109
            $region29: #{tpu_custom_call.1} parent=24 // pred_check_branch
              %112 = sbr.rel (%p110) target = $region31
            $region30: #{tpu_custom_call.1} parent=24 // pred_region
              %s113 = ssub.s32 1, %s101
              %s114 = sshra.s32 %s108, 7
              %s115 = sand.u32 %s108, 127
              %s116 = sadd.s32 %s114, %s26
              %s117 = smul.u32 %s116, 128
              %s118 = sshra.s32 %s108, 7
              %s119 = sand.u32 %s108, 127
              %s120 = sadd.s32 %s117, %s119
              %s121 = sld [smem:[#allocation5 + %s120]]
              %s122 = smul.u32 %s121, 2
              %s123 = sadd.s32 %s70, %s122
              %s124 = sadd.s32 %s123, %s80
              %s125 = smul.addr %s124, 16
              %s126 = scalar_lea.hbm %s2, %s125
              %s127 = smul.u32 %s113, 2
              %s128 = scalar_lea.vmem [#allocation2], %s127
              %s129 = scalar_lea.sflag [#allocation3], %s113
              // Predicated region
              $region32: #{tpu_custom_call.1} parent=30 // pred_check
                _
              $region33: #{tpu_custom_call.1} parent=30 // pred_check_branch
                %131 = sbr.rel target = $region35
              $region34: #{tpu_custom_call.1} parent=30 // pred_region
                %132 = sst [smem:[#allocation11]] [#allocation14]
                %133 = sst [smem:[#allocation12]] [#allocation13]
              $region35: #{tpu_custom_call.1} parent=30 // pred_fallthru
                _
              %135 = shalt.err (0)
              %s137 = sshll.u32 %s128, 4
              %s138 = int_to_ptr.vmem [resolvable:$true] %s137
              %140 = dma.hbm_to_vmem [thread:$0]  %s126, 32, %s138, %s129
            $region31: #{tpu_custom_call.1} parent=24 // pred_fallthru
              _
            %v141 = vld [vmem:[%s68] sm:$0x3]
            %v142 = vld [vmem:[%s103] sm:$0x3]
            %v143 = vmax.f32 %v141, %v142
            %144 = vst [vmem:[%s68] sm:$0x3] %v143
          $region25: #{tpu_custom_call.1} parent=15 // loop_footer
            %s98 = sadd.s32 %s96, 1
          $region26: #{tpu_custom_call.1} parent=15 // loop_footer_branch
            %95 = sbr.rel target = $region22
          $region27: #{tpu_custom_call.1} parent=15 // loop_exit
            _
        $region16: #{tpu_custom_call.1} parent=11 // pred_fallthru
          _
        %s145 = sand.u32 %s41, 1
        %s146 = scalar_lea.sflag [#allocation8], %s145
        %s147 = sand.u32 %s41, 1
        %s148 = smul.addr %s147, 2
        %s149 = scalar_lea.vmem [#allocation7], %s148
        // Predicated region
        $region36: #{tpu_custom_call.1} parent=11 // pred_check
          %p150 = pneg %p47
        $region37: #{tpu_custom_call.1} parent=11 // pred_check_branch
          %152 = sbr.rel (%p150) target = $region39
        $region38: #{tpu_custom_call.1} parent=11 // pred_region
          %s154 = ssub.s32 32, 32
          %155 = vsyncadd %s146, %s154
          %s156 = sadd.s32 %s27, %s26
          %s157 = smul.addr %s156, 32
          %s158 = scalar_lea.hbm %s3, %s157
          %s160 = sshll.u32 %s149, 4
          %s161 = int_to_ptr.vmem [resolvable:$true] %s160
          %163 = dma.vmem_to_hbm [thread:$0]  %s161, 32, %s158, %s146
        $region39: #{tpu_custom_call.1} parent=11 // pred_fallthru
          _
      $region12: #{tpu_custom_call.1} parent=5 // pred_fallthru
        _
      %p164 = scmp.le.s32.totalorder 1, %s20
      // Predicated region
      $region40: #{tpu_custom_call.1} parent=5 // pred_check
        %p165 = pneg %p164
      $region41: #{tpu_custom_call.1} parent=5 // pred_check_branch
        %167 = sbr.rel (%p165) target = $region43
      $region42: #{tpu_custom_call.1} parent=5 // pred_region
        %s168 = ssub.s32 %s20, 1
        // Predicated region
        $region44: #{tpu_custom_call.1} parent=42 // pred_check
          %p169 = pneg %p53
        $region45: #{tpu_custom_call.1} parent=42 // pred_check_branch
          %171 = sbr.rel (%p169) target = $region47
        $region46: #{tpu_custom_call.1} parent=42 // pred_region
          %s172 = sand.u32 %s44, 1
          %s173 = scalar_lea.sflag [#allocation8], %s172
          %s174 = sand.u32 %s44, 1
          %s175 = smul.addr %s174, 2
          %s176 = scalar_lea.vmem [#allocation7], %s175
          %177 = dma.done %s173, 32
        $region47: #{tpu_custom_call.1} parent=42 // pred_fallthru
          _
      $region43: #{tpu_custom_call.1} parent=5 // pred_fallthru
        _
    $region6: #{tpu_custom_call.1} parent=1 // loop_footer
      %s24 = sadd.s32 1, %s20
    $region7: #{tpu_custom_call.1} parent=1 // loop_footer_branch
      %19 = sbr.rel target = $region3
    $region8: #{tpu_custom_call.1} parent=1 // loop_exit
      _
    %178 = vsyncpa [#allocation8], 1
    %s179 = scalar_lea.sflag [#allocation8], 1
    %180 = vsyncpa %s179, 1
  %181 = vsyncmov [#allocation3]
  %s182 = vpop.sfrf %181
  %p183 = scmp.eq.s32.totalorder %s182, 0
  %p184 = pneg %p183
  %186 = shalt.err (%p184)
  %s187 = scalar_lea.sflag [#allocation3], 1
  %188 = vsyncmov %s187
  %s189 = vpop.sfrf %188
  %p190 = scmp.eq.s32.totalorder %s189, 0
  %p191 = pneg %p190
  %193 = shalt.err (%p191)

</llo_original>
